<compile_context>
chip_gen: v7x
topology: tpu7x:2x2x1
jax: 0.10.0
libtpu: 0.0.40
codegen_flags: <defaults>
</compile_context>

<pallas_src>
import functools

import jax
import jax.numpy as jnp
from jax.experimental import pallas as pl
from jax.experimental.pallas import tpu as pltpu

EPS = 1e-5               # nn.BatchNorm1d default eps
SOFTPLUS_THRESH = 20.0   # PyTorch softplus threshold used inside Mish

# Tile targets (in packed rows). 512 / 1024 are multiples of 256 (v6e/v7x MXU
# M) and 128 (v5e MXU M); the per-buffer byte cap below re-derives them for
# very wide F/H and for v7x's smaller 64 MiB VMEM.
_PASS1_TILE_ROWS = 1024      # stats pass: purely mem-bound, bigger tiles
_PASS2_TILE_ROWS = 512       # matmul pass: MXU-aligned M
_TILE_BYTES_CAP = 6 * 2**20  # per x/out block, so double-buffering fits VMEM


def _round_up(a, m):
    return ((a + m - 1) // m) * m


def _pack_factor(d):
    """Rows packed per lane-dense row so the lane dim becomes a 128 multiple."""
    if d < 128 and 128 % d == 0:
        return 128 // d
    return 1


def _plan_rows(n_rows, pack, lane_width, preferred_tile):
    """Pick a packed row tile (multiple of 8), grid size, padded row count."""
    row_bytes = lane_width * 4
    cap_rows = max(8, (_TILE_BYTES_CAP // row_bytes) // 8 * 8)
    target = max(8, min(preferred_tile, cap_rows))
    needed = -(-n_rows // pack)                    # packed rows needed (ceil)
    tile = min(target, _round_up(needed, 8))
    padded_packed = _round_up(needed, tile)
    return tile, padded_packed // tile, padded_packed * pack


def _pad_rows(x2d, n_pad):
    n, f = x2d.shape
    if n_pad == n:
        return x2d
    # Zero rows: contribute nothing to sum/sumsq; their pass-2 outputs are
    # sliced off in the wrapper.
    return jnp.concatenate(
        [x2d, jnp.zeros((n_pad - n, f), dtype=x2d.dtype)], axis=0)


def _vmem_limit(*buffer_bytes):
    est = 2 * sum(buffer_bytes) + (2 << 20)        # double-buffering + slack
    return int(min(64 * 2**20, max(32 * 2**20, est)))


# ----------------------------------------------------------------------------
# Kernel 1: per-column partial sum / sum-of-squares for one row tile.
# ----------------------------------------------------------------------------
def _stats_kernel(x_ref, sum_ref, sq_ref):
    x = x_ref[...].astype(jnp.float32)                       # (TM, Fp)
    s = jnp.sum(x, axis=0, keepdims=True)                    # (1, Fp)
    q = jnp.sum(x * x, axis=0, keepdims=True)                # (1, Fp)
    sum_ref[...] = s.reshape(sum_ref.shape)
    sq_ref[...] = q.reshape(sq_ref.shape)


# ----------------------------------------------------------------------------
# Kernel 2: fused (x @ W' + b') + Mish  (BatchNorm folded into W', b').
# ----------------------------------------------------------------------------
def _fused_kernel(x_ref, w_ref, b_ref, o_ref, *, compute_dtype):
    x = x_ref[...]
    w = w_ref[...]
    if compute_dtype is not None:                 # optional bf16 MXU operands
        x = x.astype(compute_dtype)
        w = w.astype(compute_dtype)
    z = jnp.dot(x, w, preferred_element_type=jnp.float32) + b_ref[...]
    # Mish: z * tanh(softplus(z)); tanh(softplus(z)) = p/(p+2) with
    # p = u*(u+2), u = exp(z)  -> one exp + one divide instead of
    # exp + log1p + tanh (3 EUP pushes). Guard the PyTorch threshold:
    # for z > 20, mish(z) == z in f32.
    u = jnp.exp(jnp.minimum(z, SOFTPLUS_THRESH))
    p = u * (u + 2.0)
    t = p / (p + 2.0)
    out = jnp.where(z > SOFTPLUS_THRESH, z, z * t)
    o_ref[...] = out.astype(o_ref.dtype)


# ----------------------------------------------------------------------------
# Wrapper
# ----------------------------------------------------------------------------
def features_normalization(x, gamma, beta, weight, bias, *, matmul_dtype=None):
    """x: (B, S, F) float32. weight: (H, F), bias: (H,), gamma/beta: (F,).

    matmul_dtype: optionally jnp.bfloat16 to feed narrow MXU operands
    (~2x throughput on v6e/v7x); default None keeps full f32 accuracy.
    """
    B, S, F = x.shape
    H = weight.shape[0]
    N = B * S

    x2d = x.reshape(N, F)

    # ---------------- pass 1: per-feature batch statistics ------------------
    p1 = _pack_factor(F)
    fp1 = p1 * F
    tm1, g1, n_pad1 = _plan_rows(N, p1, fp1, _PASS1_TILE_ROWS)
    x_p1 = _pad_rows(x2d, n_pad1).reshape(n_pad1 // p1, fp1)

    vmem1 = _vmem_limit(tm1 * fp1 * 4, 2 * fp1 * 4)
    part_sum, part_sq = pl.pallas_call(
        _stats_kernel,
        out_shape=(jax.ShapeDtypeStruct((g1, 1, fp1), jnp.float32),
                   jax.ShapeDtypeStruct((g1, 1, fp1), jnp.float32)),
        grid_spec=pltpu.PrefetchScalarGridSpec(
            num_scalar_prefetch=0,
            grid=(g1,),
            in_specs=[pl.BlockSpec((tm1, fp1), lambda i: (i, 0))],
            out_specs=[pl.BlockSpec((1, 1, fp1), lambda i: (i, 0, 0)),
                       pl.BlockSpec((1, 1, fp1), lambda i: (i, 0, 0))],
        ),
        compiler_params=pltpu.CompilerParams(
            dimension_semantics=("parallel",),   # independent partials
            vmem_limit_bytes=vmem1),
    )(x_p1)

    # Tiny (g1, p1, F) reductions finish in XLA.
    sum_f = part_sum.reshape(g1, p1, F).sum(axis=(0, 1))
    sq_f = part_sq.reshape(g1, p1, F).sum(axis=(0, 1))

    # ------- fold BatchNorm (training-mode batch stats) into the Linear -----
    inv_n = 1.0 / float(N)
    mean = sum_f * inv_n
    var = jnp.maximum(sq_f * inv_n - mean * mean, 0.0)   # guard cancellation
    scale = gamma * jax.lax.rsqrt(var + EPS)             # (F,)
    wt = weight.T.astype(jnp.float32)                    # (F, H)
    w_fold = wt * scale[:, None]                         # (F, H)
    b_fold = bias + (beta - mean * scale) @ wt           # (H,)

    # ---------------- pass 2: fused (x @ W' + b') + Mish --------------------
    p2 = _pack_factor(H)
    fp2, hp2 = p2 * F, p2 * H
    tm2, g2, n_pad2 = _plan_rows(N, p2, max(fp2, hp2), _PASS2_TILE_ROWS)
    x_p2 = _pad_rows(x2d, n_pad2).reshape(n_pad2 // p2, fp2)

    if p2 > 1:
        # Block-diagonal weight: p2 packed rows share one lane-dense 128-wide
        # output row, so stores are full-lane (no masked vst.msk).
        w_big = jnp.kron(jnp.eye(p2, dtype=w_fold.dtype), w_fold)  # (p2F, p2H)
        b_big = jnp.tile(b_fold, p2)
    else:
        w_big, b_big = w_fold, b_fold
    b_big = b_big.reshape(1, hp2).astype(jnp.float32)

    vmem2 = _vmem_limit(tm2 * fp2 * 4, fp2 * hp2 * 4, hp2 * 4, tm2 * hp2 * 4)
    out_packed = pl.pallas_call(
        functools.partial(_fused_kernel, compute_dtype=matmul_dtype),
        out_shape=jax.ShapeDtypeStruct((n_pad2 // p2, hp2), x.dtype),
        grid_spec=pltpu.PrefetchScalarGridSpec(
            num_scalar_prefetch=0,
            grid=(g2,),
            in_specs=[pl.BlockSpec((tm2, fp2), lambda i: (i, 0)),  # x rows
                      pl.BlockSpec((fp2, hp2), lambda i: (0, 0)),  # W'
                      pl.BlockSpec((1, hp2), lambda i: (0, 0))],   # b'
            out_specs=pl.BlockSpec((tm2, hp2), lambda i: (i, 0)),
        ),
        compiler_params=pltpu.CompilerParams(
            dimension_semantics=("parallel",),
            vmem_limit_bytes=vmem2),
    )(x_p2, w_big, b_big)

    out2d = out_packed.reshape(n_pad2, H)[:N]    # free row-major unpack + crop
    return out2d.reshape(B, S, H)


# ----------------------------------------------------------------------------
# Reference (plain JAX) for a sanity check.
# ----------------------------------------------------------------------------
def _reference(x, gamma, beta, weight, bias):
    B, S, F = x.shape
    x2d = x.reshape(B * S, F).astype(jnp.float32)
    mean = x2d.mean(axis=0)
    var = x2d.var(axis=0)  # biased, matches BatchNorm training normalization
    y = (x2d - mean) / jnp.sqrt(var + EPS) * gamma + beta
    z = y @ weight.T + bias
    sp = jnp.where(z > SOFTPLUS_THRESH, z,
                   jnp.log1p(jnp.exp(jnp.minimum(z, SOFTPLUS_THRESH))))
    out = z * jnp.tanh(sp)
    return out.reshape(B, S, weight.shape[0])


if __name__ == "__main__":
    B, S, F = 2, 8, 32
    H = F  # hidden_dim defaults to features_dim

    key = jax.random.PRNGKey(0)
    kx, kw, kb, kg, kbeta = jax.random.split(key, 5)

    x = jax.random.normal(kx, (B, S, F), dtype=jnp.float32)
    # Deterministic parameter init (shapes from module __init__).
    weight = jax.random.normal(kw, (H, F), dtype=jnp.float32) * 0.1  # Linear.weight
    bias = jax.random.normal(kb, (H,), dtype=jnp.float32) * 0.1      # Linear.bias
    gamma = 1.0 + 0.1 * jax.random.normal(kg, (F,), dtype=jnp.float32)   # BN weight
    beta = 0.1 * jax.random.normal(kbeta, (F,), dtype=jnp.float32)       # BN bias

    out = features_normalization(x, gamma, beta, weight, bias)
    out = jax.block_until_ready(out)

    ref = _reference(x, gamma, beta, weight, bias)
    assert out.shape == (B, S, H)
    assert jnp.allclose(out, ref, atol=1e-4, rtol=1e-4), "mismatch vs reference"

    print("KERNEL_OK")
</pallas_src>

<mosaic_0001>
module attributes {stable_mosaic.version = 11 : i64} {
  func.func @_stats_kernel(%arg0: i32, %arg1: memref<8x128xf32, #tpu.memory_space<vmem>>, %arg2: memref<1x1x128xf32, #tpu.memory_space<vmem>>, %arg3: memref<1x1x128xf32, #tpu.memory_space<vmem>>) attributes {dimension_semantics = [#tpu.dimension_semantics<parallel>], iteration_bounds = array<i64: 1>, scalar_prefetch = 0 : i64, scratch_operands = 0 : i64, tpu.core_type = #tpu.core_type<tc>, window_params = [{transform_indices = @transform_0, window_bounds = array<i64: 8, 128>}, {transform_indices = @transform_1, window_bounds = array<i64: 1, 1, 128>}, {transform_indices = @transform_2, window_bounds = array<i64: 1, 1, 128>}]} {
    %c0 = arith.constant 0 : index
    %c0_0 = arith.constant 0 : index
    %0 = vector.load %arg1[%c0, %c0_0] : memref<8x128xf32, #tpu.memory_space<vmem>>, vector<8x128xf32>
    %cst = arith.constant dense<0.000000e+00> : vector<128xf32>
    %1 = vector.multi_reduction <add>, %0, %cst [0] : vector<8x128xf32> to vector<128xf32>
    %2 = vector.shape_cast %1 : vector<128xf32> to vector<1x128xf32>
    %3 = arith.mulf %0, %0 : vector<8x128xf32>
    %cst_1 = arith.constant dense<0.000000e+00> : vector<128xf32>
    %4 = vector.multi_reduction <add>, %3, %cst_1 [0] : vector<8x128xf32> to vector<128xf32>
    %5 = vector.shape_cast %4 : vector<128xf32> to vector<1x128xf32>
    %6 = vector.shape_cast %2 : vector<1x128xf32> to vector<1x1x128xf32>
    %c0_2 = arith.constant 0 : index
    %c0_3 = arith.constant 0 : index
    %c0_4 = arith.constant 0 : index
    %7 = vector.load %arg2[%c0_2, %c0_3, %c0_4] : memref<1x1x128xf32, #tpu.memory_space<vmem>>, vector<1x1x128xf32>
    tpu.vector_store %arg2[%c0_2, %c0_3, %c0_4], %6 {strides = array<i32>} : memref<1x1x128xf32, #tpu.memory_space<vmem>>, vector<1x1x128xf32>,
    %8 = vector.shape_cast %5 : vector<1x128xf32> to vector<1x1x128xf32>
    %c0_5 = arith.constant 0 : index
    %c0_6 = arith.constant 0 : index
    %c0_7 = arith.constant 0 : index
    %9 = vector.load %arg3[%c0_5, %c0_6, %c0_7] : memref<1x1x128xf32, #tpu.memory_space<vmem>>, vector<1x1x128xf32>
    tpu.vector_store %arg3[%c0_5, %c0_6, %c0_7], %8 {strides = array<i32>} : memref<1x1x128xf32, #tpu.memory_space<vmem>>, vector<1x1x128xf32>,
    return
  }
  func.func @transform_0(%arg0: i32) -> (i32, i32) {
    %c0_i32 = arith.constant 0 : i32
    %c0_i32_0 = arith.constant 0 : i32
    return %arg0, %c0_i32 : i32, i32
  }
  func.func @transform_1(%arg0: i32) -> (i32, i32, i32) {
    %c0_i32 = arith.constant 0 : i32
    %c0_i32_0 = arith.constant 0 : i32
    %c0_i32_1 = arith.constant 0 : i32
    return %arg0, %c0_i32, %c0_i32_0 : i32, i32, i32
  }
  func.func @transform_2(%arg0: i32) -> (i32, i32, i32) {
    %c0_i32 = arith.constant 0 : i32
    %c0_i32_0 = arith.constant 0 : i32
    %c0_i32_1 = arith.constant 0 : i32
    return %arg0, %c0_i32, %c0_i32_0 : i32, i32, i32
  }
}

</mosaic_0001>

<llo_original>
// kernel: tpu_custom_call.1
$region0: #{tpu_custom_call.1}
  #allocation0 [shape = 'u32[]', space=smem, size = 0x4, offset = 0x4, fixed_abs, tag = 'smem constant byte address 0x4 - core index']
  #allocation1 [shape = 'u32[144,128]{1,0:T(1,128)}', space=vmem, size = 0x12000, scoped, tag = 'internal scratch']
  %s0 = inlined_call_operand.hbm [shape: f32[8,128], index: 0, kind: input, shape index: {}]
  %s1 = inlined_call_operand.hbm [shape: f32[1,1,128], index: 1, kind: output, shape index: {0}]
  %s2 = inlined_call_operand.hbm [shape: f32[1,1,128], index: 2, kind: output, shape index: {1}]
  %3 = xla_tuple %s1, %s2
  %s4 = sld [smem:[#allocation0]]
  $region26: #{tpu_custom_call.1} parent=0
    _
  %s6 = ssub.s32 1, %s4
  %s7 = scalar_select 0, %s6, %s4
  $region1: #{tpu_custom_call.1} parent=0
    #allocation2 [shape = 'u8[4096]{0}', space=vmem, size = 0x1000, scoped, tag = 'input window, operand 0, single buffered']
    #allocation3 [shape = 's32[1]{0}', space=sflag, size = 0x4, scoped, tag = 'scoped memory for tpu_custom_call.1']
    #allocation4 [shape = 's32[1]{0}', space=sflag, size = 0x4, scoped, tag = 'scoped memory for tpu_custom_call.1']
    #allocation5 [shape = 'u8[512]{0}', space=vmem, size = 0x400, scoped, tag = 'output window, operand 0, single buffered']
    #allocation6 [shape = 'u8[512]{0}', space=vmem, size = 0x400, scoped, tag = 'output window, operand 1, single buffered']
    #allocation7 [shape = 's32[1]{0}', space=sflag, size = 0x4, scoped, tag = 'scoped memory for tpu_custom_call.1']
    %8 = vsyncpa [#allocation3], 0
    %9 = vsyncpa [#allocation4], 0
    %10 = vsyncpa [#allocation7], 0
    // Predicated region
    $region2: #{tpu_custom_call.1} parent=1 // pred_check
      _
    $region3: #{tpu_custom_call.1} parent=1 // pred_check_branch
      %12 = sbr.rel (0) target = $region5
    $region4: #{tpu_custom_call.1} parent=1 // pred_region
      %s14 = ssub.s32 128, 128
      %15 = vsyncadd [#allocation3], %s14
      %s17 = sshll.u32 [#allocation2], 4
      %s18 = int_to_ptr.vmem [resolvable:$true] %s17
      %20 = dma.hbm_to_vmem [thread:$0]  %s0, 128, %s18, [#allocation3]
    $region5: #{tpu_custom_call.1} parent=1 // pred_fallthru
      _
    // Predicated region
    $region6: #{tpu_custom_call.1} parent=1 // pred_check
      _
    $region7: #{tpu_custom_call.1} parent=1 // pred_check_branch
      %22 = sbr.rel (0) target = $region9
    $region8: #{tpu_custom_call.1} parent=1 // pred_region
      %23 = dma.done [#allocation3], 128
    $region9: #{tpu_custom_call.1} parent=1 // pred_fallthru
      _
    %v24 = vld [vmem:[#allocation2] sm:$0xff]
    %v25 = vrot.slane %v24, 4
    %v26 = vadd.f32 %v24, %v25
    %v27 = vrot.slane %v26, 2
    %v28 = vadd.f32 %v26, %v27
    %v29 = vrot.slane %v28, 1
    %v30 = vadd.f32 %v28, %v29
    %v31 = vmul.f32 %v24, %v24
    %v32 = vrot.slane %v31, 4
    %v33 = vadd.f32 %v31, %v32
    %v34 = vrot.slane %v33, 2
    %v35 = vadd.f32 %v33, %v34
    %v36 = vrot.slane %v35, 1
    %v37 = vadd.f32 %v35, %v36
    %38 = vst [vmem:[#allocation5] sm:$0x1] %v30
    %39 = vst [vmem:[#allocation6] sm:$0x1] %v37
    // Predicated region
    $region10: #{tpu_custom_call.1} parent=1 // pred_check
      _
    $region11: #{tpu_custom_call.1} parent=1 // pred_check_branch
      %41 = sbr.rel (0) target = $region13
    $region12: #{tpu_custom_call.1} parent=1 // pred_region
      %s43 = ssub.s32 16, 16
      %44 = vsyncadd [#allocation4], %s43
      %s46 = sshll.u32 [#allocation5], 4
      %s47 = int_to_ptr.vmem [resolvable:$true] %s46
      %49 = dma.vmem_to_hbm [thread:$0]  %s47, 16, %s1, [#allocation4]
    $region13: #{tpu_custom_call.1} parent=1 // pred_fallthru
      _
    // Predicated region
    $region14: #{tpu_custom_call.1} parent=1 // pred_check
      _
    $region15: #{tpu_custom_call.1} parent=1 // pred_check_branch
      %51 = sbr.rel (0) target = $region17
    $region16: #{tpu_custom_call.1} parent=1 // pred_region
      %s53 = ssub.s32 16, 16
      %54 = vsyncadd [#allocation7], %s53
      %s56 = sshll.u32 [#allocation6], 4
      %s57 = int_to_ptr.vmem [resolvable:$true] %s56
      %59 = dma.vmem_to_hbm [thread:$0]  %s57, 16, %s2, [#allocation7]
    $region17: #{tpu_custom_call.1} parent=1 // pred_fallthru
      _
    // Predicated region
    $region18: #{tpu_custom_call.1} parent=1 // pred_check
      _
    $region19: #{tpu_custom_call.1} parent=1 // pred_check_branch
      %61 = sbr.rel (0) target = $region21
    $region20: #{tpu_custom_call.1} parent=1 // pred_region
      %62 = dma.done [#allocation4], 16
    $region21: #{tpu_custom_call.1} parent=1 // pred_fallthru
      _
    // Predicated region
    $region22: #{tpu_custom_call.1} parent=1 // pred_check
      _
    $region23: #{tpu_custom_call.1} parent=1 // pred_check_branch
      %64 = sbr.rel (0) target = $region25
    $region24: #{tpu_custom_call.1} parent=1 // pred_region
      %65 = dma.done [#allocation7], 16
    $region25: #{tpu_custom_call.1} parent=1 // pred_fallthru
      _
    %66 = vsyncpa [#allocation3], 1
    %67 = vsyncpa [#allocation4], 1
    %68 = vsyncpa [#allocation7], 1

</llo_original>
